<compile_context>
chip_gen: v7x
topology: tpu7x:2x2x1
jax: 0.10.0
libtpu: 0.0.40
codegen_flags: <defaults>
</compile_context>

<pallas_src>
import jax
import jax.numpy as jnp
from jax.experimental import pallas as pl
from jax.experimental.pallas import tpu as pltpu

_LANE = 128
_TARGET_BLOCK_BYTES = 4 << 20     # ~4 MiB per live buffer (any dtype)
_VMEM_LIMIT_BYTES = 40 << 20      # safe on v5e/v6e (128 MiB phys) and v7x (64 MiB phys)
_SMALL_N = 32 * 1024              # elements; below this plain fused jnp wins
_MIN_SPLIT_ROWS = 1024            # above this, keep >=2 grid programs (dual-TC v7x)


def _make_tp_kernel(scale):
    """Elementwise kernel with scale = 0.5 / m baked in at trace time."""

    def _tp_kernel(p_ref, o_ref):
        x = p_ref[...]
        # Memory-bound; compute in the native input dtype (two VPU muls/vreg).
        o_ref[...] = ((x * x) * scale).astype(o_ref.dtype)

    return _tp_kernel


def _block_rows_for(rows, itemsize):
    """Pick an 8-aligned row block targeting ~_TARGET_BLOCK_BYTES per buffer."""
    target_rows = max(8, (_TARGET_BLOCK_BYTES // (_LANE * itemsize)) // 8 * 8)
    if rows > target_rows:
        return target_rows
    if rows > _MIN_SPLIT_ROWS:
        # Split into >=2 programs so the "parallel" axis can shard across both
        # TensorCores on v7x (harmless on single-TC v5e/v6e).
        return ((rows + 1) // 2 + 7) // 8 * 8
    return rows  # full-extent block (legal even if rows % 8 != 0)


def _tp_pallas_2d(x2d, scale):
    rows, _ = x2d.shape
    itemsize = jnp.dtype(x2d.dtype).itemsize
    block_rows = _block_rows_for(rows, itemsize)
    grid = (pl.cdiv(rows, block_rows),)

    return pl.pallas_call(
        _make_tp_kernel(scale),
        out_shape=jax.ShapeDtypeStruct((rows, _LANE), x2d.dtype),
        grid_spec=pltpu.PrefetchScalarGridSpec(
            num_scalar_prefetch=0,
            grid=grid,
            in_specs=[pl.BlockSpec((block_rows, _LANE), lambda i: (i, 0))],
            out_specs=pl.BlockSpec((block_rows, _LANE), lambda i: (i, 0)),
        ),
        compiler_params=pltpu.CompilerParams(
            dimension_semantics=("parallel",),
            vmem_limit_bytes=_VMEM_LIMIT_BYTES,
        ),
    )(x2d)


def tp_forward(p, m):
    """Compute p ** 2 / (2 * m) (Tp.forward). m is a static Python scalar.

    p: any-shape float array (e.g. NCHW).
    """
    # TODO(synk): if m ever needs to be a traced array, feed `scale` via SMEM
    # scalar prefetch instead of baking it in at trace time.
    orig_shape = p.shape
    n = p.size
    scale = float(0.5 / float(m))

    # Small inputs: XLA's fused elementwise beats the fixed pallas_call cost.
    if n < _SMALL_N:
        return (p * p) * scale

    flat = jnp.reshape(p, (-1,))
    n_tail = n % _LANE
    n_main = n - n_tail

    main = flat[:n_main] if n_tail else flat
    main2d = jnp.reshape(main, (n_main // _LANE, _LANE))
    out_main = jnp.reshape(_tp_pallas_2d(main2d, scale), (-1,))

    if n_tail:
        tail = flat[n_main:]
        out_tail = (tail * tail) * scale
        out_flat = jnp.concatenate([out_main, out_tail])
    else:
        out_flat = out_main
    return jnp.reshape(out_flat, orig_shape)


if __name__ == "__main__":
    key = jax.random.PRNGKey(0)
    m = 3.5  # constructor argument Tp(m)

    def ref_fn(p):
        return p ** 2 / (2.0 * m)

    k1, k2, k3, k4 = jax.random.split(key, 4)

    # 1) Small NCHW input consistent with the module (fast path).
    p1 = jax.random.normal(k1, (2, 4, 16, 16), dtype=jnp.float32)
    o1 = jax.block_until_ready(tp_forward(p1, m))
    assert o1.shape == p1.shape and o1.dtype == p1.dtype
    assert jnp.allclose(o1, ref_fn(p1), rtol=1e-5, atol=1e-6)

    # 2) 128-aligned input -> Pallas path, 2 pipelined/parallel grid programs.
    p2 = jax.random.normal(k2, (4, 8, 128, 128), dtype=jnp.float32)
    o2 = jax.block_until_ready(tp_forward(p2, m))
    assert o2.shape == p2.shape and o2.dtype == p2.dtype
    assert jnp.allclose(o2, ref_fn(p2), rtol=1e-5, atol=1e-6)

    # 3) Non-128-divisible size -> Pallas prefix + jnp tail (no pad/slice copies).
    p3 = jax.random.normal(k3, (3, 5, 67, 37), dtype=jnp.float32)
    o3 = jax.block_until_ready(tp_forward(p3, m))
    assert o3.shape == p3.shape and o3.dtype == p3.dtype
    assert jnp.allclose(o3, ref_fn(p3), rtol=1e-5, atol=1e-6)

    # 4) bf16 input, computed in native dtype inside the kernel.
    p4 = jax.random.normal(k4, (4, 8, 128, 128), dtype=jnp.bfloat16)
    o4 = jax.block_until_ready(tp_forward(p4, m))
    assert o4.shape == p4.shape and o4.dtype == jnp.bfloat16
    assert jnp.allclose(o4.astype(jnp.float32), ref_fn(p4.astype(jnp.float32)),
                        rtol=5e-2, atol=1e-2)

    print("KERNEL_OK")
</pallas_src>

<mosaic_0001>
module attributes {stable_mosaic.version = 11 : i64} {
  func.func @_tp_kernel(%arg0: i32, %arg1: memref<2048x128xf32, #tpu.memory_space<vmem>>, %arg2: memref<2048x128xf32, #tpu.memory_space<vmem>>) attributes {dimension_semantics = [#tpu.dimension_semantics<parallel>], iteration_bounds = array<i64: 2>, scalar_prefetch = 0 : i64, scratch_operands = 0 : i64, tpu.core_type = #tpu.core_type<tc>, window_params = [{transform_indices = @transform_0, window_bounds = array<i64: 2048, 128>}, {transform_indices = @transform_1, window_bounds = array<i64: 2048, 128>}]} {
    %c0 = arith.constant 0 : index
    %c0_0 = arith.constant 0 : index
    %0 = vector.load %arg1[%c0, %c0_0] : memref<2048x128xf32, #tpu.memory_space<vmem>>, vector<2048x128xf32>
    %1 = arith.mulf %0, %0 : vector<2048x128xf32>
    %cst = arith.constant 0.142857149 : f32
    %2 = vector.broadcast %cst : f32 to vector<2048x128xf32>
    %3 = arith.mulf %1, %2 : vector<2048x128xf32>
    %c0_1 = arith.constant 0 : index
    %c0_2 = arith.constant 0 : index
    %4 = vector.load %arg2[%c0_1, %c0_2] : memref<2048x128xf32, #tpu.memory_space<vmem>>, vector<2048x128xf32>
    tpu.vector_store %arg2[%c0_1, %c0_2], %3 {strides = array<i32>} : memref<2048x128xf32, #tpu.memory_space<vmem>>, vector<2048x128xf32>,
    return
  }
  func.func @transform_0(%arg0: i32) -> (i32, i32) {
    %c0_i32 = arith.constant 0 : i32
    %c0_i32_0 = arith.constant 0 : i32
    return %arg0, %c0_i32 : i32, i32
  }
  func.func @transform_1(%arg0: i32) -> (i32, i32) {
    %c0_i32 = arith.constant 0 : i32
    %c0_i32_0 = arith.constant 0 : i32
    return %arg0, %c0_i32 : i32, i32
  }
}

</mosaic_0001>

<llo_original>
// kernel: tpu_custom_call.1
$region0: #{tpu_custom_call.1}
  #allocation0 [shape = 'u32[]', space=smem, size = 0x4, offset = 0x4, fixed_abs, tag = 'smem constant byte address 0x4 - core index']
  #allocation1 [shape = 'u32[144,128]{1,0:T(1,128)}', space=vmem, size = 0x12000, scoped, tag = 'internal scratch']
  %s0 = inlined_call_operand.hbm [shape: f32[4096,128], index: 0, kind: input, shape index: {}]
  %s1 = inlined_call_operand.hbm [shape: f32[4096,128], index: 1, kind: output, shape index: {}]
  %s2 = sld [smem:[#allocation0]]
  $region41: #{tpu_custom_call.1} parent=0
    _
  %s4 = ssub.s32 1, %s2
  %s5 = scalar_select 0, %s4, %s2
  $region1: #{tpu_custom_call.1} parent=0
    #allocation2 [shape = 'u8[2097152]{0}', space=vmem, size = 0x200000, scoped, tag = 'input window, operand 0']
    #allocation3 [shape = 's32[2]{0}', space=sflag, size = 0x8, scoped, tag = 'scoped memory for tpu_custom_call.1']
    #allocation4 [shape = 's32[2]{0}', space=sflag, size = 0x8, scoped, tag = 'scoped memory for tpu_custom_call.1']
    #allocation5 [shape = 'u8[2097152]{0}', space=vmem, size = 0x200000, scoped, tag = 'output window, operand 0']
    %6 = vsyncpa [#allocation3], 0
    %s7 = scalar_lea.sflag [#allocation3], 1
    %8 = vsyncpa %s7, 0
    %9 = vsyncpa [#allocation4], 0
    %s10 = scalar_lea.sflag [#allocation4], 1
    %11 = vsyncpa %s10, 0
    loop: start=0, step=1, limit=4
    $region2: #{tpu_custom_call.1} parent=1 // loop_pre_header
      _
    $region3: #{tpu_custom_call.1} parent=1 // loop_header
      %s13 = sphi 0, %s17
      %p14 = scmp.ge.s32.totalorder %s13, 4
      %s23 = sphi 0, %s25
      %s26 = sphi 0, %s23
      %s27 = sphi 0, %s26
      %s43 = sphi 0, %s27
      %s49 = sphi 0, %s51
      %s52 = sphi 0, %s49
      %s53 = sphi 0, %s52
      %s69 = sphi 0, %s53
    $region4: #{tpu_custom_call.1} parent=1 // loop_header_branch
      %16 = sbr.rel (%p14) target = $region8
    $region5: #{tpu_custom_call.1} parent=1 // loop_body
      %s18 = ssub.s32 %s13, 1
      %s19 = ssub.s32 %s13, 2
      %s20 = sadd.s32 %s13, 1
      %s21 = ssub.s32 %s13, %s20
      %p22 = scmp.eq.s32.totalorder %s21, 0
      %s24 = sadd.s32 %s23, 1
      %s25 = scalar_select %p22, %s23, %s24
      %p28 = pneg %p22
      %p29 = scmp.eq.s32.totalorder %s13, 1
      %p30 = por %p28, %p29
      %p31 = scmp.ne.s32.totalorder %s23, %s26
      %p32 = scmp.eq.s32.totalorder %s13, 0
      %p33 = por %p31, %p32
      %p34 = scmp.ne.s32.totalorder %s23, %s26
      %p35 = scmp.eq.s32.totalorder %s18, 1
      %p36 = por %p34, %p35
      %p37 = scmp.ne.s32.totalorder %s26, %s27
      %p38 = scmp.eq.s32.totalorder %s18, 0
      %p39 = por %p37, %p38
      %p40 = scmp.ne.s32.totalorder %s26, %s27
      %p41 = scmp.eq.s32.totalorder %s19, 1
      %p42 = por %p40, %p41
      %p44 = scmp.ne.s32.totalorder %s27, %s43
      %p45 = scmp.eq.s32.totalorder %s19, 0
      %p46 = por %p44, %p45
      %s47 = ssub.s32 %s13, %s20
      %p48 = scmp.eq.s32.totalorder %s47, 0
      %s50 = sadd.s32 %s49, 1
      %s51 = scalar_select %p48, %s49, %s50
      %p54 = pneg %p48
      %p55 = scmp.eq.s32.totalorder %s13, 1
      %p56 = por %p54, %p55
      %p57 = scmp.ne.s32.totalorder %s49, %s52
      %p58 = scmp.eq.s32.totalorder %s13, 0
      %p59 = por %p57, %p58
      %p60 = scmp.ne.s32.totalorder %s49, %s52
      %p61 = scmp.eq.s32.totalorder %s18, 1
      %p62 = por %p60, %p61
      %p63 = scmp.ne.s32.totalorder %s52, %s53
      %p64 = scmp.eq.s32.totalorder %s18, 0
      %p65 = por %p63, %p64
      %p66 = scmp.ne.s32.totalorder %s52, %s53
      %p67 = scmp.eq.s32.totalorder %s19, 1
      %p68 = por %p66, %p67
      %p70 = scmp.ne.s32.totalorder %s53, %s69
      %p71 = scmp.eq.s32.totalorder %s19, 0
      %p72 = por %p70, %p71
      %p73 = scmp.le.s32.totalorder 1, %s13
      %p74 = scmp.lt.s32.totalorder %s13, 3
      %p75 = pnand %p73, %p74
      %p76 = pneg %p75
      // Predicated region
      $region9: #{tpu_custom_call.1} parent=5 // pred_check
        _
      $region10: #{tpu_custom_call.1} parent=5 // pred_check_branch
        %78 = sbr.rel (%p75) target = $region12
      $region11: #{tpu_custom_call.1} parent=5 // pred_region
        %s79 = ssub.s32 %s13, 1
      $region12: #{tpu_custom_call.1} parent=5 // pred_fallthru
        _
      %p80 = scmp.lt.s32.totalorder %s13, 2
      // Predicated region
      $region13: #{tpu_custom_call.1} parent=5 // pred_check
        %p81 = pneg %p80
      $region14: #{tpu_custom_call.1} parent=5 // pred_check_branch
        %83 = sbr.rel (%p81) target = $region16
      $region15: #{tpu_custom_call.1} parent=5 // pred_region
        // Predicated region
        $region17: #{tpu_custom_call.1} parent=15 // pred_check
          %p84 = pneg %p33
        $region18: #{tpu_custom_call.1} parent=15 // pred_check_branch
          %86 = sbr.rel (%p84) target = $region20
        $region19: #{tpu_custom_call.1} parent=15 // pred_region
          %s87 = sand.u32 %s23, 1
          %s88 = scalar_lea.sflag [#allocation3], %s87
          %s89 = sand.u32 %s23, 1
          %s90 = smul.addr %s89, 2048
          %s91 = scalar_lea.vmem [#allocation2], %s90
          %s92 = smul.u32 256, %s13
          %s94 = ssub.s32 32768, 32768
          %95 = vsyncadd %s88, %s94
          %s96 = smul.addr %s92, 128
          %s97 = scalar_lea.hbm %s0, %s96
          %s98 = sshll.u32 %s91, 4
          %s99 = int_to_ptr.vmem [resolvable:$true] %s98
          %104 = dma.hbm_to_vmem [thread:$0]  %s97, 32768, %s99, %s88, 128, 128, 8
        $region20: #{tpu_custom_call.1} parent=15 // pred_fallthru
          _
      $region16: #{tpu_custom_call.1} parent=5 // pred_fallthru
        _
      %p105 = scmp.le.s32.totalorder 1, %s13
      %p106 = scmp.lt.s32.totalorder %s13, 3
      %p107 = pnand %p105, %p106
      %p108 = pneg %p107
      // Predicated region
      $region21: #{tpu_custom_call.1} parent=5 // pred_check
        _
      $region22: #{tpu_custom_call.1} parent=5 // pred_check_branch
        %110 = sbr.rel (%p107) target = $region24
      $region23: #{tpu_custom_call.1} parent=5 // pred_region
        %s111 = ssub.s32 %s13, 1
        %s112 = sand.u32 %s26, 1
        %s113 = scalar_lea.sflag [#allocation3], %s112
        %s114 = sand.u32 %s26, 1
        %s115 = smul.addr %s114, 2048
        %s116 = scalar_lea.vmem [#allocation2], %s115
        // Predicated region
        $region25: #{tpu_custom_call.1} parent=23 // pred_check
          %p117 = pneg %p39
        $region26: #{tpu_custom_call.1} parent=23 // pred_check_branch
          %119 = sbr.rel (%p117) target = $region28
        $region27: #{tpu_custom_call.1} parent=23 // pred_region
          %120 = dma.done %s113, 32768
        $region28: #{tpu_custom_call.1} parent=23 // pred_fallthru
          _
        %s121 = sand.u32 %s26, 1
        %s122 = scalar_lea.sflag [#allocation3], %s121
        %s123 = sand.u32 %s26, 1
        %s124 = smul.addr %s123, 2048
        %s125 = scalar_lea.vmem [#allocation2], %s124
        %p126 = pneg %p39
        %p127 = pneg %p36
        %p128 = pneg %p65
        %p129 = pneg %p62
        %s130 = sand.u32 %s52, 1
        %s131 = scalar_lea.sflag [#allocation4], %s130
        %s132 = sand.u32 %s52, 1
        %s133 = smul.addr %s132, 2048
        %s134 = scalar_lea.vmem [#allocation5], %s133
        %s135 = smul.u32 256, %s18
        %s136 = smul.u32 256, %s18
        %v137 = vld [vmem:[%s116] sm:$0xff]
        %v138 = vld [vmem:[%s116 + $0x8] sm:$0xff]
        %v139 = vld [vmem:[%s116 + $0x10] sm:$0xff]
        %v140 = vld [vmem:[%s116 + $0x18] sm:$0xff]
        %v141 = vld [vmem:[%s116 + $0x20] sm:$0xff]
        %v142 = vld [vmem:[%s116 + $0x28] sm:$0xff]
        %v143 = vld [vmem:[%s116 + $0x30] sm:$0xff]
        %v144 = vld [vmem:[%s116 + $0x38] sm:$0xff]
        %v145 = vld [vmem:[%s116 + $0x40] sm:$0xff]
        %v146 = vld [vmem:[%s116 + $0x48] sm:$0xff]
        %v147 = vld [vmem:[%s116 + $0x50] sm:$0xff]
        %v148 = vld [vmem:[%s116 + $0x58] sm:$0xff]
        %v149 = vld [vmem:[%s116 + $0x60] sm:$0xff]
        %v150 = vld [vmem:[%s116 + $0x68] sm:$0xff]
        %v151 = vld [vmem:[%s116 + $0x70] sm:$0xff]
        %v152 = vld [vmem:[%s116 + $0x78] sm:$0xff]
        %v153 = vld [vmem:[%s116 + $0x80] sm:$0xff]
        %v154 = vld [vmem:[%s116 + $0x88] sm:$0xff]
        %v155 = vld [vmem:[%s116 + $0x90] sm:$0xff]
        %v156 = vld [vmem:[%s116 + $0x98] sm:$0xff]
        %v157 = vld [vmem:[%s116 + $0xa0] sm:$0xff]
        %v158 = vld [vmem:[%s116 + $0xa8] sm:$0xff]
        %v159 = vld [vmem:[%s116 + $0xb0] sm:$0xff]
        %v160 = vld [vmem:[%s116 + $0xb8] sm:$0xff]
        %v161 = vld [vmem:[%s116 + $0xc0] sm:$0xff]
        %v162 = vld [vmem:[%s116 + $0xc8] sm:$0xff]
        %v163 = vld [vmem:[%s116 + $0xd0] sm:$0xff]
        %v164 = vld [vmem:[%s116 + $0xd8] sm:$0xff]
        %v165 = vld [vmem:[%s116 + $0xe0] sm:$0xff]
        %v166 = vld [vmem:[%s116 + $0xe8] sm:$0xff]
        %v167 = vld [vmem:[%s116 + $0xf0] sm:$0xff]
        %v168 = vld [vmem:[%s116 + $0xf8] sm:$0xff]
        %v169 = vld [vmem:[%s116 + $0x100] sm:$0xff]
        %v170 = vld [vmem:[%s116 + $0x108] sm:$0xff]
        %v171 = vld [vmem:[%s116 + $0x110] sm:$0xff]
        %v172 = vld [vmem:[%s116 + $0x118] sm:$0xff]
        %v173 = vld [vmem:[%s116 + $0x120] sm:$0xff]
        %v174 = vld [vmem:[%s116 + $0x128] sm:$0xff]
        %v175 = vld [vmem:[%s116 + $0x130] sm:$0xff]
        %v176 = vld [vmem:[%s116 + $0x138] sm:$0xff]
        %v177 = vld [vmem:[%s116 + $0x140] sm:$0xff]
        %v178 = vld [vmem:[%s116 + $0x148] sm:$0xff]
        %v179 = vld [vmem:[%s116 + $0x150] sm:$0xff]
        %v180 = vld [vmem:[%s116 + $0x158] sm:$0xff]
        %v181 = vld [vmem:[%s116 + $0x160] sm:$0xff]
        %v182 = vld [vmem:[%s116 + $0x168] sm:$0xff]
        %v183 = vld [vmem:[%s116 + $0x170] sm:$0xff]
        %v184 = vld [vmem:[%s116 + $0x178] sm:$0xff]
        %v185 = vld [vmem:[%s116 + $0x180] sm:$0xff]
        %v186 = vld [vmem:[%s116 + $0x188] sm:$0xff]
        %v187 = vld [vmem:[%s116 + $0x190] sm:$0xff]
        %v188 = vld [vmem:[%s116 + $0x198] sm:$0xff]
        %v189 = vld [vmem:[%s116 + $0x1a0] sm:$0xff]
        %v190 = vld [vmem:[%s116 + $0x1a8] sm:$0xff]
        %v191 = vld [vmem:[%s116 + $0x1b0] sm:$0xff]
        %v192 = vld [vmem:[%s116 + $0x1b8] sm:$0xff]
        %v193 = vld [vmem:[%s116 + $0x1c0] sm:$0xff]
        %v194 = vld [vmem:[%s116 + $0x1c8] sm:$0xff]
        %v195 = vld [vmem:[%s116 + $0x1d0] sm:$0xff]
        %v196 = vld [vmem:[%s116 + $0x1d8] sm:$0xff]
        %v197 = vld [vmem:[%s116 + $0x1e0] sm:$0xff]
        %v198 = vld [vmem:[%s116 + $0x1e8] sm:$0xff]
        %v199 = vld [vmem:[%s116 + $0x1f0] sm:$0xff]
        %v200 = vld [vmem:[%s116 + $0x1f8] sm:$0xff]
        %v201 = vld [vmem:[%s116 + $0x200] sm:$0xff]
        %v202 = vld [vmem:[%s116 + $0x208] sm:$0xff]
        %v203 = vld [vmem:[%s116 + $0x210] sm:$0xff]
        %v204 = vld [vmem:[%s116 + $0x218] sm:$0xff]
        %v205 = vld [vmem:[%s116 + $0x220] sm:$0xff]
        %v206 = vld [vmem:[%s116 + $0x228] sm:$0xff]
        %v207 = vld [vmem:[%s116 + $0x230] sm:$0xff]
        %v208 = vld [vmem:[%s116 + $0x238] sm:$0xff]
        %v209 = vld [vmem:[%s116 + $0x240] sm:$0xff]
        %v210 = vld [vmem:[%s116 + $0x248] sm:$0xff]
        %v211 = vld [vmem:[%s116 + $0x250] sm:$0xff]
        %v212 = vld [vmem:[%s116 + $0x258] sm:$0xff]
        %v213 = vld [vmem:[%s116 + $0x260] sm:$0xff]
        %v214 = vld [vmem:[%s116 + $0x268] sm:$0xff]
        %v215 = vld [vmem:[%s116 + $0x270] sm:$0xff]
        %v216 = vld [vmem:[%s116 + $0x278] sm:$0xff]
        %v217 = vld [vmem:[%s116 + $0x280] sm:$0xff]
        %v218 = vld [vmem:[%s116 + $0x288] sm:$0xff]
        %v219 = vld [vmem:[%s116 + $0x290] sm:$0xff]
        %v220 = vld [vmem:[%s116 + $0x298] sm:$0xff]
        %v221 = vld [vmem:[%s116 + $0x2a0] sm:$0xff]
        %v222 = vld [vmem:[%s116 + $0x2a8] sm:$0xff]
        %v223 = vld [vmem:[%s116 + $0x2b0] sm:$0xff]
        %v224 = vld [vmem:[%s116 + $0x2b8] sm:$0xff]
        %v225 = vld [vmem:[%s116 + $0x2c0] sm:$0xff]
        %v226 = vld [vmem:[%s116 + $0x2c8] sm:$0xff]
        %v227 = vld [vmem:[%s116 + $0x2d0] sm:$0xff]
        %v228 = vld [vmem:[%s116 + $0x2d8] sm:$0xff]
        %v229 = vld [vmem:[%s116 + $0x2e0] sm:$0xff]
        %v230 = vld [vmem:[%s116 + $0x2e8] sm:$0xff]
        %v231 = vld [vmem:[%s116 + $0x2f0] sm:$0xff]
        %v232 = vld [vmem:[%s116 + $0x2f8] sm:$0xff]
        %v233 = vld [vmem:[%s116 + $0x300] sm:$0xff]
        %v234 = vld [vmem:[%s116 + $0x308] sm:$0xff]
        %v235 = vld [vmem:[%s116 + $0x310] sm:$0xff]
        %v236 = vld [vmem:[%s116 + $0x318] sm:$0xff]
        %v237 = vld [vmem:[%s116 + $0x320] sm:$0xff]
        %v238 = vld [vmem:[%s116 + $0x328] sm:$0xff]
        %v239 = vld [vmem:[%s116 + $0x330] sm:$0xff]
        %v240 = vld [vmem:[%s116 + $0x338] sm:$0xff]
        %v241 = vld [vmem:[%s116 + $0x340] sm:$0xff]
        %v242 = vld [vmem:[%s116 + $0x348] sm:$0xff]
        %v243 = vld [vmem:[%s116 + $0x350] sm:$0xff]
        %v244 = vld [vmem:[%s116 + $0x358] sm:$0xff]
        %v245 = vld [vmem:[%s116 + $0x360] sm:$0xff]
        %v246 = vld [vmem:[%s116 + $0x368] sm:$0xff]
        %v247 = vld [vmem:[%s116 + $0x370] sm:$0xff]
        %v248 = vld [vmem:[%s116 + $0x378] sm:$0xff]
        %v249 = vld [vmem:[%s116 + $0x380] sm:$0xff]
        %v250 = vld [vmem:[%s116 + $0x388] sm:$0xff]
        %v251 = vld [vmem:[%s116 + $0x390] sm:$0xff]
        %v252 = vld [vmem:[%s116 + $0x398] sm:$0xff]
        %v253 = vld [vmem:[%s116 + $0x3a0] sm:$0xff]
        %v254 = vld [vmem:[%s116 + $0x3a8] sm:$0xff]
        %v255 = vld [vmem:[%s116 + $0x3b0] sm:$0xff]
        %v256 = vld [vmem:[%s116 + $0x3b8] sm:$0xff]
        %v257 = vld [vmem:[%s116 + $0x3c0] sm:$0xff]
        %v258 = vld [vmem:[%s116 + $0x3c8] sm:$0xff]
        %v259 = vld [vmem:[%s116 + $0x3d0] sm:$0xff]
        %v260 = vld [vmem:[%s116 + $0x3d8] sm:$0xff]
        %v261 = vld [vmem:[%s116 + $0x3e0] sm:$0xff]
        %v262 = vld [vmem:[%s116 + $0x3e8] sm:$0xff]
        %v263 = vld [vmem:[%s116 + $0x3f0] sm:$0xff]
        %v264 = vld [vmem:[%s116 + $0x3f8] sm:$0xff]
        %v265 = vld [vmem:[%s116 + $0x400] sm:$0xff]
        %v266 = vld [vmem:[%s116 + $0x408] sm:$0xff]
        %v267 = vld [vmem:[%s116 + $0x410] sm:$0xff]
        %v268 = vld [vmem:[%s116 + $0x418] sm:$0xff]
        %v269 = vld [vmem:[%s116 + $0x420] sm:$0xff]
        %v270 = vld [vmem:[%s116 + $0x428] sm:$0xff]
        %v271 = vld [vmem:[%s116 + $0x430] sm:$0xff]
        %v272 = vld [vmem:[%s116 + $0x438] sm:$0xff]
        %v273 = vld [vmem:[%s116 + $0x440] sm:$0xff]
        %v274 = vld [vmem:[%s116 + $0x448] sm:$0xff]
        %v275 = vld [vmem:[%s116 + $0x450] sm:$0xff]
        %v276 = vld [vmem:[%s116 + $0x458] sm:$0xff]
        %v277 = vld [vmem:[%s116 + $0x460] sm:$0xff]
        %v278 = vld [vmem:[%s116 + $0x468] sm:$0xff]
        %v279 = vld [vmem:[%s116 + $0x470] sm:$0xff]
        %v280 = vld [vmem:[%s116 + $0x478] sm:$0xff]
        %v281 = vld [vmem:[%s116 + $0x480] sm:$0xff]
        %v282 = vld [vmem:[%s116 + $0x488] sm:$0xff]
        %v283 = vld [vmem:[%s116 + $0x490] sm:$0xff]
        %v284 = vld [vmem:[%s116 + $0x498] sm:$0xff]
        %v285 = vld [vmem:[%s116 + $0x4a0] sm:$0xff]
        %v286 = vld [vmem:[%s116 + $0x4a8] sm:$0xff]
        %v287 = vld [vmem:[%s116 + $0x4b0] sm:$0xff]
        %v288 = vld [vmem:[%s116 + $0x4b8] sm:$0xff]
        %v289 = vld [vmem:[%s116 + $0x4c0] sm:$0xff]
        %v290 = vld [vmem:[%s116 + $0x4c8] sm:$0xff]
        %v291 = vld [vmem:[%s116 + $0x4d0] sm:$0xff]
        %v292 = vld [vmem:[%s116 + $0x4d8] sm:$0xff]
        %v293 = vld [vmem:[%s116 + $0x4e0] sm:$0xff]
        %v294 = vld [vmem:[%s116 + $0x4e8] sm:$0xff]
        %v295 = vld [vmem:[%s116 + $0x4f0] sm:$0xff]
        %v296 = vld [vmem:[%s116 + $0x4f8] sm:$0xff]
        %v297 = vld [vmem:[%s116 + $0x500] sm:$0xff]
        %v298 = vld [vmem:[%s116 + $0x508] sm:$0xff]
        %v299 = vld [vmem:[%s116 + $0x510] sm:$0xff]
        %v300 = vld [vmem:[%s116 + $0x518] sm:$0xff]
        %v301 = vld [vmem:[%s116 + $0x520] sm:$0xff]
        %v302 = vld [vmem:[%s116 + $0x528] sm:$0xff]
        %v303 = vld [vmem:[%s116 + $0x530] sm:$0xff]
        %v304 = vld [vmem:[%s116 + $0x538] sm:$0xff]
        %v305 = vld [vmem:[%s116 + $0x540] sm:$0xff]
        %v306 = vld [vmem:[%s116 + $0x548] sm:$0xff]
        %v307 = vld [vmem:[%s116 + $0x550] sm:$0xff]
        %v308 = vld [vmem:[%s116 + $0x558] sm:$0xff]
        %v309 = vld [vmem:[%s116 + $0x560] sm:$0xff]
        %v310 = vld [vmem:[%s116 + $0x568] sm:$0xff]
        %v311 = vld [vmem:[%s116 + $0x570] sm:$0xff]
        %v312 = vld [vmem:[%s116 + $0x578] sm:$0xff]
        %v313 = vld [vmem:[%s116 + $0x580] sm:$0xff]
        %v314 = vld [vmem:[%s116 + $0x588] sm:$0xff]
        %v315 = vld [vmem:[%s116 + $0x590] sm:$0xff]
        %v316 = vld [vmem:[%s116 + $0x598] sm:$0xff]
        %v317 = vld [vmem:[%s116 + $0x5a0] sm:$0xff]
        %v318 = vld [vmem:[%s116 + $0x5a8] sm:$0xff]
        %v319 = vld [vmem:[%s116 + $0x5b0] sm:$0xff]
        %v320 = vld [vmem:[%s116 + $0x5b8] sm:$0xff]
        %v321 = vld [vmem:[%s116 + $0x5c0] sm:$0xff]
        %v322 = vld [vmem:[%s116 + $0x5c8] sm:$0xff]
        %v323 = vld [vmem:[%s116 + $0x5d0] sm:$0xff]
        %v324 = vld [vmem:[%s116 + $0x5d8] sm:$0xff]
        %v325 = vld [vmem:[%s116 + $0x5e0] sm:$0xff]
        %v326 = vld [vmem:[%s116 + $0x5e8] sm:$0xff]
        %v327 = vld [vmem:[%s116 + $0x5f0] sm:$0xff]
        %v328 = vld [vmem:[%s116 + $0x5f8] sm:$0xff]
        %v329 = vld [vmem:[%s116 + $0x600] sm:$0xff]
        %v330 = vld [vmem:[%s116 + $0x608] sm:$0xff]
        %v331 = vld [vmem:[%s116 + $0x610] sm:$0xff]
        %v332 = vld [vmem:[%s116 + $0x618] sm:$0xff]
        %v333 = vld [vmem:[%s116 + $0x620] sm:$0xff]
        %v334 = vld [vmem:[%s116 + $0x628] sm:$0xff]
        %v335 = vld [vmem:[%s116 + $0x630] sm:$0xff]
        %v336 = vld [vmem:[%s116 + $0x638] sm:$0xff]
        %v337 = vld [vmem:[%s116 + $0x640] sm:$0xff]
        %v338 = vld [vmem:[%s116 + $0x648] sm:$0xff]
        %v339 = vld [vmem:[%s116 + $0x650] sm:$0xff]
        %v340 = vld [vmem:[%s116 + $0x658] sm:$0xff]
        %v341 = vld [vmem:[%s116 + $0x660] sm:$0xff]
        %v342 = vld [vmem:[%s116 + $0x668] sm:$0xff]
        %v343 = vld [vmem:[%s116 + $0x670] sm:$0xff]
        %v344 = vld [vmem:[%s116 + $0x678] sm:$0xff]
        %v345 = vld [vmem:[%s116 + $0x680] sm:$0xff]
        %v346 = vld [vmem:[%s116 + $0x688] sm:$0xff]
        %v347 = vld [vmem:[%s116 + $0x690] sm:$0xff]
        %v348 = vld [vmem:[%s116 + $0x698] sm:$0xff]
        %v349 = vld [vmem:[%s116 + $0x6a0] sm:$0xff]
        %v350 = vld [vmem:[%s116 + $0x6a8] sm:$0xff]
        %v351 = vld [vmem:[%s116 + $0x6b0] sm:$0xff]
        %v352 = vld [vmem:[%s116 + $0x6b8] sm:$0xff]
        %v353 = vld [vmem:[%s116 + $0x6c0] sm:$0xff]
        %v354 = vld [vmem:[%s116 + $0x6c8] sm:$0xff]
        %v355 = vld [vmem:[%s116 + $0x6d0] sm:$0xff]
        %v356 = vld [vmem:[%s116 + $0x6d8] sm:$0xff]
        %v357 = vld [vmem:[%s116 + $0x6e0] sm:$0xff]
        %v358 = vld [vmem:[%s116 + $0x6e8] sm:$0xff]
        %v359 = vld [vmem:[%s116 + $0x6f0] sm:$0xff]
        %v360 = vld [vmem:[%s116 + $0x6f8] sm:$0xff]
        %v361 = vld [vmem:[%s116 + $0x700] sm:$0xff]
        %v362 = vld [vmem:[%s116 + $0x708] sm:$0xff]
        %v363 = vld [vmem:[%s116 + $0x710] sm:$0xff]
        %v364 = vld [vmem:[%s116 + $0x718] sm:$0xff]
        %v365 = vld [vmem:[%s116 + $0x720] sm:$0xff]
        %v366 = vld [vmem:[%s116 + $0x728] sm:$0xff]
        %v367 = vld [vmem:[%s116 + $0x730] sm:$0xff]
        %v368 = vld [vmem:[%s116 + $0x738] sm:$0xff]
        %v369 = vld [vmem:[%s116 + $0x740] sm:$0xff]
        %v370 = vld [vmem:[%s116 + $0x748] sm:$0xff]
        %v371 = vld [vmem:[%s116 + $0x750] sm:$0xff]
        %v372 = vld [vmem:[%s116 + $0x758] sm:$0xff]
        %v373 = vld [vmem:[%s116 + $0x760] sm:$0xff]
        %v374 = vld [vmem:[%s116 + $0x768] sm:$0xff]
        %v375 = vld [vmem:[%s116 + $0x770] sm:$0xff]
        %v376 = vld [vmem:[%s116 + $0x778] sm:$0xff]
        %v377 = vld [vmem:[%s116 + $0x780] sm:$0xff]
        %v378 = vld [vmem:[%s116 + $0x788] sm:$0xff]
        %v379 = vld [vmem:[%s116 + $0x790] sm:$0xff]
        %v380 = vld [vmem:[%s116 + $0x798] sm:$0xff]
        %v381 = vld [vmem:[%s116 + $0x7a0] sm:$0xff]
        %v382 = vld [vmem:[%s116 + $0x7a8] sm:$0xff]
        %v383 = vld [vmem:[%s116 + $0x7b0] sm:$0xff]
        %v384 = vld [vmem:[%s116 + $0x7b8] sm:$0xff]
        %v385 = vld [vmem:[%s116 + $0x7c0] sm:$0xff]
        %v386 = vld [vmem:[%s116 + $0x7c8] sm:$0xff]
        %v387 = vld [vmem:[%s116 + $0x7d0] sm:$0xff]
        %v388 = vld [vmem:[%s116 + $0x7d8] sm:$0xff]
        %v389 = vld [vmem:[%s116 + $0x7e0] sm:$0xff]
        %v390 = vld [vmem:[%s116 + $0x7e8] sm:$0xff]
        %v391 = vld [vmem:[%s116 + $0x7f0] sm:$0xff]
        %v392 = vld [vmem:[%s116 + $0x7f8] sm:$0xff]
        %v393 = vmul.f32 %v137, %v137
        %v394 = vmul.f32 %v138, %v138
        %v395 = vmul.f32 %v139, %v139
        %v396 = vmul.f32 %v140, %v140
        %v397 = vmul.f32 %v141, %v141
        %v398 = vmul.f32 %v142, %v142
        %v399 = vmul.f32 %v143, %v143
        %v400 = vmul.f32 %v144, %v144
        %v401 = vmul.f32 %v145, %v145
        %v402 = vmul.f32 %v146, %v146
        %v403 = vmul.f32 %v147, %v147
        %v404 = vmul.f32 %v148, %v148
        %v405 = vmul.f32 %v149, %v149
        %v406 = vmul.f32 %v150, %v150
        %v407 = vmul.f32 %v151, %v151
        %v408 = vmul.f32 %v152, %v152
        %v409 = vmul.f32 %v153, %v153
        %v410 = vmul.f32 %v154, %v154
        %v411 = vmul.f32 %v155, %v155
        %v412 = vmul.f32 %v156, %v156
        %v413 = vmul.f32 %v157, %v157
        %v414 = vmul.f32 %v158, %v158
        %v415 = vmul.f32 %v159, %v159
        %v416 = vmul.f32 %v160, %v160
        %v417 = vmul.f32 %v161, %v161
        %v418 = vmul.f32 %v162, %v162
        %v419 = vmul.f32 %v163, %v163
        %v420 = vmul.f32 %v164, %v164
        %v421 = vmul.f32 %v165, %v165
        %v422 = vmul.f32 %v166, %v166
        %v423 = vmul.f32 %v167, %v167
        %v424 = vmul.f32 %v168, %v168
        %v425 = vmul.f32 %v169, %v169
        %v426 = vmul.f32 %v170, %v170
        %v427 = vmul.f32 %v171, %v171
        %v428 = vmul.f32 %v172, %v172
        %v429 = vmul.f32 %v173, %v173
        %v430 = vmul.f32 %v174, %v174
        %v431 = vmul.f32 %v175, %v175
        %v432 = vmul.f32 %v176, %v176
        %v433 = vmul.f32 %v177, %v177
        %v434 = vmul.f32 %v178, %v178
        %v435 = vmul.f32 %v179, %v179
        %v436 = vmul.f32 %v180, %v180
        %v437 = vmul.f32 %v181, %v181
        %v438 = vmul.f32 %v182, %v182
        %v439 = vmul.f32 %v183, %v183
        %v440 = vmul.f32 %v184, %v184
        %v441 = vmul.f32 %v185, %v185
        %v442 = vmul.f32 %v186, %v186
        %v443 = vmul.f32 %v187, %v187
        %v444 = vmul.f32 %v188, %v188
        %v445 = vmul.f32 %v189, %v189
        %v446 = vmul.f32 %v190, %v190
        %v447 = vmul.f32 %v191, %v191
        %v448 = vmul.f32 %v192, %v192
        %v449 = vmul.f32 %v193, %v193
        %v450 = vmul.f32 %v194, %v194
        %v451 = vmul.f32 %v195, %v195
        %v452 = vmul.f32 %v196, %v196
        %v453 = vmul.f32 %v197, %v197
        %v454 = vmul.f32 %v198, %v198
        %v455 = vmul.f32 %v199, %v199
        %v456 = vmul.f32 %v200, %v200
        %v457 = vmul.f32 %v201, %v201
        %v458 = vmul.f32 %v202, %v202
        %v459 = vmul.f32 %v203, %v203
        %v460 = vmul.f32 %v204, %v204
        %v461 = vmul.f32 %v205, %v205
        %v462 = vmul.f32 %v206, %v206
        %v463 = vmul.f32 %v207, %v207
        %v464 = vmul.f32 %v208, %v208
        %v465 = vmul.f32 %v209, %v209
        %v466 = vmul.f32 %v210, %v210
        %v467 = vmul.f32 %v211, %v211
        %v468 = vmul.f32 %v212, %v212
        %v469 = vmul.f32 %v213, %v213
        %v470 = vmul.f32 %v214, %v214
        %v471 = vmul.f32 %v215, %v215
        %v472 = vmul.f32 %v216, %v216
        %v473 = vmul.f32 %v217, %v217
        %v474 = vmul.f32 %v218, %v218
        %v475 = vmul.f32 %v219, %v219
        %v476 = vmul.f32 %v220, %v220
        %v477 = vmul.f32 %v221, %v221
        %v478 = vmul.f32 %v222, %v222
        %v479 = vmul.f32 %v223, %v223
        %v480 = vmul.f32 %v224, %v224
        %v481 = vmul.f32 %v225, %v225
        %v482 = vmul.f32 %v226, %v226
        %v483 = vmul.f32 %v227, %v227
        %v484 = vmul.f32 %v228, %v228
        %v485 = vmul.f32 %v229, %v229
        %v486 = vmul.f32 %v230, %v230
        %v487 = vmul.f32 %v231, %v231
        %v488 = vmul.f32 %v232, %v232
        %v489 = vmul.f32 %v233, %v233
        %v490 = vmul.f32 %v234, %v234
        %v491 = vmul.f32 %v235, %v235
        %v492 = vmul.f32 %v236, %v236
        %v493 = vmul.f32 %v237, %v237
        %v494 = vmul.f32 %v238, %v238
        %v495 = vmul.f32 %v239, %v239
        %v496 = vmul.f32 %v240, %v240
        %v497 = vmul.f32 %v241, %v241
        %v498 = vmul.f32 %v242, %v242
        %v499 = vmul.f32 %v243, %v243
        %v500 = vmul.f32 %v244, %v244
        %v501 = vmul.f32 %v245, %v245
        %v502 = vmul.f32 %v246, %v246
        %v503 = vmul.f32 %v247, %v247
        %v504 = vmul.f32 %v248, %v248
        %v505 = vmul.f32 %v249, %v249
        %v506 = vmul.f32 %v250, %v250
        %v507 = vmul.f32 %v251, %v251
        %v508 = vmul.f32 %v252, %v252
        %v509 = vmul.f32 %v253, %v253
        %v510 = vmul.f32 %v254, %v254
        %v511 = vmul.f32 %v255, %v255
        %v512 = vmul.f32 %v256, %v256
        %v513 = vmul.f32 %v257, %v257
        %v514 = vmul.f32 %v258, %v258
        %v515 = vmul.f32 %v259, %v259
        %v516 = vmul.f32 %v260, %v260
        %v517 = vmul.f32 %v261, %v261
        %v518 = vmul.f32 %v262, %v262
        %v519 = vmul.f32 %v263, %v263
        %v520 = vmul.f32 %v264, %v264
        %v521 = vmul.f32 %v265, %v265
        %v522 = vmul.f32 %v266, %v266
        %v523 = vmul.f32 %v267, %v267
        %v524 = vmul.f32 %v268, %v268
        %v525 = vmul.f32 %v269, %v269
        %v526 = vmul.f32 %v270, %v270
        %v527 = vmul.f32 %v271, %v271
        %v528 = vmul.f32 %v272, %v272
        %v529 = vmul.f32 %v273, %v273
        %v530 = vmul.f32 %v274, %v274
        %v531 = vmul.f32 %v275, %v275
        %v532 = vmul.f32 %v276, %v276
        %v533 = vmul.f32 %v277, %v277
        %v534 = vmul.f32 %v278, %v278
        %v535 = vmul.f32 %v279, %v279
        %v536 = vmul.f32 %v280, %v280
        %v537 = vmul.f32 %v281, %v281
        %v538 = vmul.f32 %v282, %v282
        %v539 = vmul.f32 %v283, %v283
        %v540 = vmul.f32 %v284, %v284
        %v541 = vmul.f32 %v285, %v285
        %v542 = vmul.f32 %v286, %v286
        %v543 = vmul.f32 %v287, %v287
        %v544 = vmul.f32 %v288, %v288
        %v545 = vmul.f32 %v289, %v289
        %v546 = vmul.f32 %v290, %v290
        %v547 = vmul.f32 %v291, %v291
        %v548 = vmul.f32 %v292, %v292
        %v549 = vmul.f32 %v293, %v293
        %v550 = vmul.f32 %v294, %v294
        %v551 = vmul.f32 %v295, %v295
        %v552 = vmul.f32 %v296, %v296
        %v553 = vmul.f32 %v297, %v297
        %v554 = vmul.f32 %v298, %v298
        %v555 = vmul.f32 %v299, %v299
        %v556 = vmul.f32 %v300, %v300
        %v557 = vmul.f32 %v301, %v301
        %v558 = vmul.f32 %v302, %v302
        %v559 = vmul.f32 %v303, %v303
        %v560 = vmul.f32 %v304, %v304
        %v561 = vmul.f32 %v305, %v305
        %v562 = vmul.f32 %v306, %v306
        %v563 = vmul.f32 %v307, %v307
        %v564 = vmul.f32 %v308, %v308
        %v565 = vmul.f32 %v309, %v309
        %v566 = vmul.f32 %v310, %v310
        %v567 = vmul.f32 %v311, %v311
        %v568 = vmul.f32 %v312, %v312
        %v569 = vmul.f32 %v313, %v313
        %v570 = vmul.f32 %v314, %v314
        %v571 = vmul.f32 %v315, %v315
        %v572 = vmul.f32 %v316, %v316
        %v573 = vmul.f32 %v317, %v317
        %v574 = vmul.f32 %v318, %v318
        %v575 = vmul.f32 %v319, %v319
        %v576 = vmul.f32 %v320, %v320
        %v577 = vmul.f32 %v321, %v321
        %v578 = vmul.f32 %v322, %v322
        %v579 = vmul.f32 %v323, %v323
        %v580 = vmul.f32 %v324, %v324
        %v581 = vmul.f32 %v325, %v325
        %v582 = vmul.f32 %v326, %v326
        %v583 = vmul.f32 %v327, %v327
        %v584 = vmul.f32 %v328, %v328
        %v585 = vmul.f32 %v329, %v329
        %v586 = vmul.f32 %v330, %v330
        %v587 = vmul.f32 %v331, %v331
        %v588 = vmul.f32 %v332, %v332
        %v589 = vmul.f32 %v333, %v333
        %v590 = vmul.f32 %v334, %v334
        %v591 = vmul.f32 %v335, %v335
        %v592 = vmul.f32 %v336, %v336
        %v593 = vmul.f32 %v337, %v337
        %v594 = vmul.f32 %v338, %v338
        %v595 = vmul.f32 %v339, %v339
        %v596 = vmul.f32 %v340, %v340
        %v597 = vmul.f32 %v341, %v341
        %v598 = vmul.f32 %v342, %v342
        %v599 = vmul.f32 %v343, %v343
        %v600 = vmul.f32 %v344, %v344
        %v601 = vmul.f32 %v345, %v345
        %v602 = vmul.f32 %v346, %v346
        %v603 = vmul.f32 %v347, %v347
        %v604 = vmul.f32 %v348, %v348
        %v605 = vmul.f32 %v349, %v349
        %v606 = vmul.f32 %v350, %v350
        %v607 = vmul.f32 %v351, %v351
        %v608 = vmul.f32 %v352, %v352
        %v609 = vmul.f32 %v353, %v353
        %v610 = vmul.f32 %v354, %v354
        %v611 = vmul.f32 %v355, %v355
        %v612 = vmul.f32 %v356, %v356
        %v613 = vmul.f32 %v357, %v357
        %v614 = vmul.f32 %v358, %v358
        %v615 = vmul.f32 %v359, %v359
        %v616 = vmul.f32 %v360, %v360
        %v617 = vmul.f32 %v361, %v361
        %v618 = vmul.f32 %v362, %v362
        %v619 = vmul.f32 %v363, %v363
        %v620 = vmul.f32 %v364, %v364
        %v621 = vmul.f32 %v365, %v365
        %v622 = vmul.f32 %v366, %v366
        %v623 = vmul.f32 %v367, %v367
        %v624 = vmul.f32 %v368, %v368
        %v625 = vmul.f32 %v369, %v369
        %v626 = vmul.f32 %v370, %v370
        %v627 = vmul.f32 %v371, %v371
        %v628 = vmul.f32 %v372, %v372
        %v629 = vmul.f32 %v373, %v373
        %v630 = vmul.f32 %v374, %v374
        %v631 = vmul.f32 %v375, %v375
        %v632 = vmul.f32 %v376, %v376
        %v633 = vmul.f32 %v377, %v377
        %v634 = vmul.f32 %v378, %v378
        %v635 = vmul.f32 %v379, %v379
        %v636 = vmul.f32 %v380, %v380
        %v637 = vmul.f32 %v381, %v381
        %v638 = vmul.f32 %v382, %v382
        %v639 = vmul.f32 %v383, %v383
        %v640 = vmul.f32 %v384, %v384
        %v641 = vmul.f32 %v385, %v385
        %v642 = vmul.f32 %v386, %v386
        %v643 = vmul.f32 %v387, %v387
        %v644 = vmul.f32 %v388, %v388
        %v645 = vmul.f32 %v389, %v389
        %v646 = vmul.f32 %v390, %v390
        %v647 = vmul.f32 %v391, %v391
        %v648 = vmul.f32 %v392, %v392
        %v649 = vmul.f32 %v393, 0.14285715
        %v650 = vmul.f32 %v394, 0.14285715
        %v651 = vmul.f32 %v395, 0.14285715
        %v652 = vmul.f32 %v396, 0.14285715
        %v653 = vmul.f32 %v397, 0.14285715
        %v654 = vmul.f32 %v398, 0.14285715
        %v655 = vmul.f32 %v399, 0.14285715
        %v656 = vmul.f32 %v400, 0.14285715
        %v657 = vmul.f32 %v401, 0.14285715
        %v658 = vmul.f32 %v402, 0.14285715
        %v659 = vmul.f32 %v403, 0.14285715
        %v660 = vmul.f32 %v404, 0.14285715
        %v661 = vmul.f32 %v405, 0.14285715
        %v662 = vmul.f32 %v406, 0.14285715
        %v663 = vmul.f32 %v407, 0.14285715
        %v664 = vmul.f32 %v408, 0.14285715
        %v665 = vmul.f32 %v409, 0.14285715
        %v666 = vmul.f32 %v410, 0.14285715
        %v667 = vmul.f32 %v411, 0.14285715
        %v668 = vmul.f32 %v412, 0.14285715
        %v669 = vmul.f32 %v413, 0.14285715
        %v670 = vmul.f32 %v414, 0.14285715
        %v671 = vmul.f32 %v415, 0.14285715
        %v672 = vmul.f32 %v416, 0.14285715
        %v673 = vmul.f32 %v417, 0.14285715
        %v674 = vmul.f32 %v418, 0.14285715
        %v675 = vmul.f32 %v419, 0.14285715
        %v676 = vmul.f32 %v420, 0.14285715
        %v677 = vmul.f32 %v421, 0.14285715
        %v678 = vmul.f32 %v422, 0.14285715
        %v679 = vmul.f32 %v423, 0.14285715
        %v680 = vmul.f32 %v424, 0.14285715
        %v681 = vmul.f32 %v425, 0.14285715
        %v682 = vmul.f32 %v426, 0.14285715
        %v683 = vmul.f32 %v427, 0.14285715
        %v684 = vmul.f32 %v428, 0.14285715
        %v685 = vmul.f32 %v429, 0.14285715
        %v686 = vmul.f32 %v430, 0.14285715
        %v687 = vmul.f32 %v431, 0.14285715
        %v688 = vmul.f32 %v432, 0.14285715
        %v689 = vmul.f32 %v433, 0.14285715
        %v690 = vmul.f32 %v434, 0.14285715
        %v691 = vmul.f32 %v435, 0.14285715
        %v692 = vmul.f32 %v436, 0.14285715
        %v693 = vmul.f32 %v437, 0.14285715
        %v694 = vmul.f32 %v438, 0.14285715
        %v695 = vmul.f32 %v439, 0.14285715
        %v696 = vmul.f32 %v440, 0.14285715
        %v697 = vmul.f32 %v441, 0.14285715
        %v698 = vmul.f32 %v442, 0.14285715
        %v699 = vmul.f32 %v443, 0.14285715
        %v700 = vmul.f32 %v444, 0.14285715
        %v701 = vmul.f32 %v445, 0.14285715
        %v702 = vmul.f32 %v446, 0.14285715
        %v703 = vmul.f32 %v447, 0.14285715
        %v704 = vmul.f32 %v448, 0.14285715
        %v705 = vmul.f32 %v449, 0.14285715
        %v706 = vmul.f32 %v450, 0.14285715
        %v707 = vmul.f32 %v451, 0.14285715
        %v708 = vmul.f32 %v452, 0.14285715
        %v709 = vmul.f32 %v453, 0.14285715
        %v710 = vmul.f32 %v454, 0.14285715
        %v711 = vmul.f32 %v455, 0.14285715
        %v712 = vmul.f32 %v456, 0.14285715
        %v713 = vmul.f32 %v457, 0.14285715
        %v714 = vmul.f32 %v458, 0.14285715
        %v715 = vmul.f32 %v459, 0.14285715
        %v716 = vmul.f32 %v460, 0.14285715
        %v717 = vmul.f32 %v461, 0.14285715
        %v718 = vmul.f32 %v462, 0.14285715
        %v719 = vmul.f32 %v463, 0.14285715
        %v720 = vmul.f32 %v464, 0.14285715
        %v721 = vmul.f32 %v465, 0.14285715
        %v722 = vmul.f32 %v466, 0.14285715
        %v723 = vmul.f32 %v467, 0.14285715
        %v724 = vmul.f32 %v468, 0.14285715
        %v725 = vmul.f32 %v469, 0.14285715
        %v726 = vmul.f32 %v470, 0.14285715
        %v727 = vmul.f32 %v471, 0.14285715
        %v728 = vmul.f32 %v472, 0.14285715
        %v729 = vmul.f32 %v473, 0.14285715
        %v730 = vmul.f32 %v474, 0.14285715
        %v731 = vmul.f32 %v475, 0.14285715
        %v732 = vmul.f32 %v476, 0.14285715
        %v733 = vmul.f32 %v477, 0.14285715
        %v734 = vmul.f32 %v478, 0.14285715
        %v735 = vmul.f32 %v479, 0.14285715
        %v736 = vmul.f32 %v480, 0.14285715
        %v737 = vmul.f32 %v481, 0.14285715
        %v738 = vmul.f32 %v482, 0.14285715
        %v739 = vmul.f32 %v483, 0.14285715
        %v740 = vmul.f32 %v484, 0.14285715
        %v741 = vmul.f32 %v485, 0.14285715
        %v742 = vmul.f32 %v486, 0.14285715
        %v743 = vmul.f32 %v487, 0.14285715
        %v744 = vmul.f32 %v488, 0.14285715
        %v745 = vmul.f32 %v489, 0.14285715
        %v746 = vmul.f32 %v490, 0.14285715
        %v747 = vmul.f32 %v491, 0.14285715
        %v748 = vmul.f32 %v492, 0.14285715
        %v749 = vmul.f32 %v493, 0.14285715
        %v750 = vmul.f32 %v494, 0.14285715
        %v751 = vmul.f32 %v495, 0.14285715
        %v752 = vmul.f32 %v496, 0.14285715
        %v753 = vmul.f32 %v497, 0.14285715
        %v754 = vmul.f32 %v498, 0.14285715
        %v755 = vmul.f32 %v499, 0.14285715
        %v756 = vmul.f32 %v500, 0.14285715
        %v757 = vmul.f32 %v501, 0.14285715
        %v758 = vmul.f32 %v502, 0.14285715
        %v759 = vmul.f32 %v503, 0.14285715
        %v760 = vmul.f32 %v504, 0.14285715
        %v761 = vmul.f32 %v505, 0.14285715
        %v762 = vmul.f32 %v506, 0.14285715
        %v763 = vmul.f32 %v507, 0.14285715
        %v764 = vmul.f32 %v508, 0.14285715
        %v765 = vmul.f32 %v509, 0.14285715
        %v766 = vmul.f32 %v510, 0.14285715
        %v767 = vmul.f32 %v511, 0.14285715
        %v768 = vmul.f32 %v512, 0.14285715
        %v769 = vmul.f32 %v513, 0.14285715
        %v770 = vmul.f32 %v514, 0.14285715
        %v771 = vmul.f32 %v515, 0.14285715
        %v772 = vmul.f32 %v516, 0.14285715
        %v773 = vmul.f32 %v517, 0.14285715
        %v774 = vmul.f32 %v518, 0.14285715
        %v775 = vmul.f32 %v519, 0.14285715
        %v776 = vmul.f32 %v520, 0.14285715
        %v777 = vmul.f32 %v521, 0.14285715
        %v778 = vmul.f32 %v522, 0.14285715
        %v779 = vmul.f32 %v523, 0.14285715
        %v780 = vmul.f32 %v524, 0.14285715
        %v781 = vmul.f32 %v525, 0.14285715
        %v782 = vmul.f32 %v526, 0.14285715
        %v783 = vmul.f32 %v527, 0.14285715
        %v784 = vmul.f32 %v528, 0.14285715
        %v785 = vmul.f32 %v529, 0.14285715
        %v786 = vmul.f32 %v530, 0.14285715
        %v787 = vmul.f32 %v531, 0.14285715
        %v788 = vmul.f32 %v532, 0.14285715
        %v789 = vmul.f32 %v533, 0.14285715
        %v790 = vmul.f32 %v534, 0.14285715
        %v791 = vmul.f32 %v535, 0.14285715
        %v792 = vmul.f32 %v536, 0.14285715
        %v793 = vmul.f32 %v537, 0.14285715
        %v794 = vmul.f32 %v538, 0.14285715
        %v795 = vmul.f32 %v539, 0.14285715
        %v796 = vmul.f32 %v540, 0.14285715
        %v797 = vmul.f32 %v541, 0.14285715
        %v798 = vmul.f32 %v542, 0.14285715
        %v799 = vmul.f32 %v543, 0.14285715
        %v800 = vmul.f32 %v544, 0.14285715
        %v801 = vmul.f32 %v545, 0.14285715
        %v802 = vmul.f32 %v546, 0.14285715
        %v803 = vmul.f32 %v547, 0.14285715
        %v804 = vmul.f32 %v548, 0.14285715
        %v805 = vmul.f32 %v549, 0.14285715
        %v806 = vmul.f32 %v550, 0.14285715
        %v807 = vmul.f32 %v551, 0.14285715
        %v808 = vmul.f32 %v552, 0.14285715
        %v809 = vmul.f32 %v553, 0.14285715
        %v810 = vmul.f32 %v554, 0.14285715
        %v811 = vmul.f32 %v555, 0.14285715
        %v812 = vmul.f32 %v556, 0.14285715
        %v813 = vmul.f32 %v557, 0.14285715
        %v814 = vmul.f32 %v558, 0.14285715
        %v815 = vmul.f32 %v559, 0.14285715
        %v816 = vmul.f32 %v560, 0.14285715
        %v817 = vmul.f32 %v561, 0.14285715
        %v818 = vmul.f32 %v562, 0.14285715
        %v819 = vmul.f32 %v563, 0.14285715
        %v820 = vmul.f32 %v564, 0.14285715
        %v821 = vmul.f32 %v565, 0.14285715
        %v822 = vmul.f32 %v566, 0.14285715
        %v823 = vmul.f32 %v567, 0.14285715
        %v824 = vmul.f32 %v568, 0.14285715
        %v825 = vmul.f32 %v569, 0.14285715
        %v826 = vmul.f32 %v570, 0.14285715
        %v827 = vmul.f32 %v571, 0.14285715
        %v828 = vmul.f32 %v572, 0.14285715
        %v829 = vmul.f32 %v573, 0.14285715
        %v830 = vmul.f32 %v574, 0.14285715
        %v831 = vmul.f32 %v575, 0.14285715
        %v832 = vmul.f32 %v576, 0.14285715
        %v833 = vmul.f32 %v577, 0.14285715
        %v834 = vmul.f32 %v578, 0.14285715
        %v835 = vmul.f32 %v579, 0.14285715
        %v836 = vmul.f32 %v580, 0.14285715
        %v837 = vmul.f32 %v581, 0.14285715
        %v838 = vmul.f32 %v582, 0.14285715
        %v839 = vmul.f32 %v583, 0.14285715
        %v840 = vmul.f32 %v584, 0.14285715
        %v841 = vmul.f32 %v585, 0.14285715
        %v842 = vmul.f32 %v586, 0.14285715
        %v843 = vmul.f32 %v587, 0.14285715
        %v844 = vmul.f32 %v588, 0.14285715
        %v845 = vmul.f32 %v589, 0.14285715
        %v846 = vmul.f32 %v590, 0.14285715
        %v847 = vmul.f32 %v591, 0.14285715
        %v848 = vmul.f32 %v592, 0.14285715
        %v849 = vmul.f32 %v593, 0.14285715
        %v850 = vmul.f32 %v594, 0.14285715
        %v851 = vmul.f32 %v595, 0.14285715
        %v852 = vmul.f32 %v596, 0.14285715
        %v853 = vmul.f32 %v597, 0.14285715
        %v854 = vmul.f32 %v598, 0.14285715
        %v855 = vmul.f32 %v599, 0.14285715
        %v856 = vmul.f32 %v600, 0.14285715
        %v857 = vmul.f32 %v601, 0.14285715
        %v858 = vmul.f32 %v602, 0.14285715
        %v859 = vmul.f32 %v603, 0.14285715
        %v860 = vmul.f32 %v604, 0.14285715
        %v861 = vmul.f32 %v605, 0.14285715
        %v862 = vmul.f32 %v606, 0.14285715
        %v863 = vmul.f32 %v607, 0.14285715
        %v864 = vmul.f32 %v608, 0.14285715
        %v865 = vmul.f32 %v609, 0.14285715
        %v866 = vmul.f32 %v610, 0.14285715
        %v867 = vmul.f32 %v611, 0.14285715
        %v868 = vmul.f32 %v612, 0.14285715
        %v869 = vmul.f32 %v613, 0.14285715
        %v870 = vmul.f32 %v614, 0.14285715
        %v871 = vmul.f32 %v615, 0.14285715
        %v872 = vmul.f32 %v616, 0.14285715
        %v873 = vmul.f32 %v617, 0.14285715
        %v874 = vmul.f32 %v618, 0.14285715
        %v875 = vmul.f32 %v619, 0.14285715
        %v876 = vmul.f32 %v620, 0.14285715
        %v877 = vmul.f32 %v621, 0.14285715
        %v878 = vmul.f32 %v622, 0.14285715
        %v879 = vmul.f32 %v623, 0.14285715
        %v880 = vmul.f32 %v624, 0.14285715
        %v881 = vmul.f32 %v625, 0.14285715
        %v882 = vmul.f32 %v626, 0.14285715
        %v883 = vmul.f32 %v627, 0.14285715
        %v884 = vmul.f32 %v628, 0.14285715
        %v885 = vmul.f32 %v629, 0.14285715
        %v886 = vmul.f32 %v630, 0.14285715
        %v887 = vmul.f32 %v631, 0.14285715
        %v888 = vmul.f32 %v632, 0.14285715
        %v889 = vmul.f32 %v633, 0.14285715
        %v890 = vmul.f32 %v634, 0.14285715
        %v891 = vmul.f32 %v635, 0.14285715
        %v892 = vmul.f32 %v636, 0.14285715
        %v893 = vmul.f32 %v637, 0.14285715
        %v894 = vmul.f32 %v638, 0.14285715
        %v895 = vmul.f32 %v639, 0.14285715
        %v896 = vmul.f32 %v640, 0.14285715
        %v897 = vmul.f32 %v641, 0.14285715
        %v898 = vmul.f32 %v642, 0.14285715
        %v899 = vmul.f32 %v643, 0.14285715
        %v900 = vmul.f32 %v644, 0.14285715
        %v901 = vmul.f32 %v645, 0.14285715
        %v902 = vmul.f32 %v646, 0.14285715
        %v903 = vmul.f32 %v647, 0.14285715
        %v904 = vmul.f32 %v648, 0.14285715
        %905 = vst [vmem:[%s134] sm:$0xff] %v649
        %906 = vst [vmem:[%s134 + $0x8] sm:$0xff] %v650
        %907 = vst [vmem:[%s134 + $0x10] sm:$0xff] %v651
        %908 = vst [vmem:[%s134 + $0x18] sm:$0xff] %v652
        %909 = vst [vmem:[%s134 + $0x20] sm:$0xff] %v653
        %910 = vst [vmem:[%s134 + $0x28] sm:$0xff] %v654
        %911 = vst [vmem:[%s134 + $0x30] sm:$0xff] %v655
        %912 = vst [vmem:[%s134 + $0x38] sm:$0xff] %v656
        %913 = vst [vmem:[%s134 + $0x40] sm:$0xff] %v657
        %914 = vst [vmem:[%s134 + $0x48] sm:$0xff] %v658
        %915 = vst [vmem:[%s134 + $0x50] sm:$0xff] %v659
        %916 = vst [vmem:[%s134 + $0x58] sm:$0xff] %v660
        %917 = vst [vmem:[%s134 + $0x60] sm:$0xff] %v661
        %918 = vst [vmem:[%s134 + $0x68] sm:$0xff] %v662
        %919 = vst [vmem:[%s134 + $0x70] sm:$0xff] %v663
        %920 = vst [vmem:[%s134 + $0x78] sm:$0xff] %v664
        %921 = vst [vmem:[%s134 + $0x80] sm:$0xff] %v665
        %922 = vst [vmem:[%s134 + $0x88] sm:$0xff] %v666
        %923 = vst [vmem:[%s134 + $0x90] sm:$0xff] %v667
        %924 = vst [vmem:[%s134 + $0x98] sm:$0xff] %v668
        %925 = vst [vmem:[%s134 + $0xa0] sm:$0xff] %v669
        %926 = vst [vmem:[%s134 + $0xa8] sm:$0xff] %v670
        %927 = vst [vmem:[%s134 + $0xb0] sm:$0xff] %v671
        %928 = vst [vmem:[%s134 + $0xb8] sm:$0xff] %v672
        %929 = vst [vmem:[%s134 + $0xc0] sm:$0xff] %v673
        %930 = vst [vmem:[%s134 + $0xc8] sm:$0xff] %v674
        %931 = vst [vmem:[%s134 + $0xd0] sm:$0xff] %v675
        %932 = vst [vmem:[%s134 + $0xd8] sm:$0xff] %v676
        %933 = vst [vmem:[%s134 + $0xe0] sm:$0xff] %v677
        %934 = vst [vmem:[%s134 + $0xe8] sm:$0xff] %v678
        %935 = vst [vmem:[%s134 + $0xf0] sm:$0xff] %v679
        %936 = vst [vmem:[%s134 + $0xf8] sm:$0xff] %v680
        %937 = vst [vmem:[%s134 + $0x100] sm:$0xff] %v681
        %938 = vst [vmem:[%s134 + $0x108] sm:$0xff] %v682
        %939 = vst [vmem:[%s134 + $0x110] sm:$0xff] %v683
        %940 = vst [vmem:[%s134 + $0x118] sm:$0xff] %v684
        %941 = vst [vmem:[%s134 + $0x120] sm:$0xff] %v685
        %942 = vst [vmem:[%s134 + $0x128] sm:$0xff] %v686
        %943 = vst [vmem:[%s134 + $0x130] sm:$0xff] %v687
        %944 = vst [vmem:[%s134 + $0x138] sm:$0xff] %v688
        %945 = vst [vmem:[%s134 + $0x140] sm:$0xff] %v689
        %946 = vst [vmem:[%s134 + $0x148] sm:$0xff] %v690
        %947 = vst [vmem:[%s134 + $0x150] sm:$0xff] %v691
        %948 = vst [vmem:[%s134 + $0x158] sm:$0xff] %v692
        %949 = vst [vmem:[%s134 + $0x160] sm:$0xff] %v693
        %950 = vst [vmem:[%s134 + $0x168] sm:$0xff] %v694
        %951 = vst [vmem:[%s134 + $0x170] sm:$0xff] %v695
        %952 = vst [vmem:[%s134 + $0x178] sm:$0xff] %v696
        %953 = vst [vmem:[%s134 + $0x180] sm:$0xff] %v697
        %954 = vst [vmem:[%s134 + $0x188] sm:$0xff] %v698
        %955 = vst [vmem:[%s134 + $0x190] sm:$0xff] %v699
        %956 = vst [vmem:[%s134 + $0x198] sm:$0xff] %v700
        %957 = vst [vmem:[%s134 + $0x1a0] sm:$0xff] %v701
        %958 = vst [vmem:[%s134 + $0x1a8] sm:$0xff] %v702
        %959 = vst [vmem:[%s134 + $0x1b0] sm:$0xff] %v703
        %960 = vst [vmem:[%s134 + $0x1b8] sm:$0xff] %v704
        %961 = vst [vmem:[%s134 + $0x1c0] sm:$0xff] %v705
        %962 = vst [vmem:[%s134 + $0x1c8] sm:$0xff] %v706
        %963 = vst [vmem:[%s134 + $0x1d0] sm:$0xff] %v707
        %964 = vst [vmem:[%s134 + $0x1d8] sm:$0xff] %v708
        %965 = vst [vmem:[%s134 + $0x1e0] sm:$0xff] %v709
        %966 = vst [vmem:[%s134 + $0x1e8] sm:$0xff] %v710
        %967 = vst [vmem:[%s134 + $0x1f0] sm:$0xff] %v711
        %968 = vst [vmem:[%s134 + $0x1f8] sm:$0xff] %v712
        %969 = vst [vmem:[%s134 + $0x200] sm:$0xff] %v713
        %970 = vst [vmem:[%s134 + $0x208] sm:$0xff] %v714
        %971 = vst [vmem:[%s134 + $0x210] sm:$0xff] %v715
        %972 = vst [vmem:[%s134 + $0x218] sm:$0xff] %v716
        %973 = vst [vmem:[%s134 + $0x220] sm:$0xff] %v717
        %974 = vst [vmem:[%s134 + $0x228] sm:$0xff] %v718
        %975 = vst [vmem:[%s134 + $0x230] sm:$0xff] %v719
        %976 = vst [vmem:[%s134 + $0x238] sm:$0xff] %v720
        %977 = vst [vmem:[%s134 + $0x240] sm:$0xff] %v721
        %978 = vst [vmem:[%s134 + $0x248] sm:$0xff] %v722
        %979 = vst [vmem:[%s134 + $0x250] sm:$0xff] %v723
        %980 = vst [vmem:[%s134 + $0x258] sm:$0xff] %v724
        %981 = vst [vmem:[%s134 + $0x260] sm:$0xff] %v725
        %982 = vst [vmem:[%s134 + $0x268] sm:$0xff] %v726
        %983 = vst [vmem:[%s134 + $0x270] sm:$0xff] %v727
        %984 = vst [vmem:[%s134 + $0x278] sm:$0xff] %v728
        %985 = vst [vmem:[%s134 + $0x280] sm:$0xff] %v729
        %986 = vst [vmem:[%s134 + $0x288] sm:$0xff] %v730
        %987 = vst [vmem:[%s134 + $0x290] sm:$0xff] %v731
        %988 = vst [vmem:[%s134 + $0x298] sm:$0xff] %v732
        %989 = vst [vmem:[%s134 + $0x2a0] sm:$0xff] %v733
        %990 = vst [vmem:[%s134 + $0x2a8] sm:$0xff] %v734
        %991 = vst [vmem:[%s134 + $0x2b0] sm:$0xff] %v735
        %992 = vst [vmem:[%s134 + $0x2b8] sm:$0xff] %v736
        %993 = vst [vmem:[%s134 + $0x2c0] sm:$0xff] %v737
        %994 = vst [vmem:[%s134 + $0x2c8] sm:$0xff] %v738
        %995 = vst [vmem:[%s134 + $0x2d0] sm:$0xff] %v739
        %996 = vst [vmem:[%s134 + $0x2d8] sm:$0xff] %v740
        %997 = vst [vmem:[%s134 + $0x2e0] sm:$0xff] %v741
        %998 = vst [vmem:[%s134 + $0x2e8] sm:$0xff] %v742
        %999 = vst [vmem:[%s134 + $0x2f0] sm:$0xff] %v743
        %1000 = vst [vmem:[%s134 + $0x2f8] sm:$0xff] %v744
        %1001 = vst [vmem:[%s134 + $0x300] sm:$0xff] %v745
        %1002 = vst [vmem:[%s134 + $0x308] sm:$0xff] %v746
        %1003 = vst [vmem:[%s134 + $0x310] sm:$0xff] %v747
        %1004 = vst [vmem:[%s134 + $0x318] sm:$0xff] %v748
        %1005 = vst [vmem:[%s134 + $0x320] sm:$0xff] %v749
        %1006 = vst [vmem:[%s134 + $0x328] sm:$0xff] %v750
        %1007 = vst [vmem:[%s134 + $0x330] sm:$0xff] %v751
        %1008 = vst [vmem:[%s134 + $0x338] sm:$0xff] %v752
        %1009 = vst [vmem:[%s134 + $0x340] sm:$0xff] %v753
        %1010 = vst [vmem:[%s134 + $0x348] sm:$0xff] %v754
        %1011 = vst [vmem:[%s134 + $0x350] sm:$0xff] %v755
        %1012 = vst [vmem:[%s134 + $0x358] sm:$0xff] %v756
        %1013 = vst [vmem:[%s134 + $0x360] sm:$0xff] %v757
        %1014 = vst [vmem:[%s134 + $0x368] sm:$0xff] %v758
        %1015 = vst [vmem:[%s134 + $0x370] sm:$0xff] %v759
        %1016 = vst [vmem:[%s134 + $0x378] sm:$0xff] %v760
        %1017 = vst [vmem:[%s134 + $0x380] sm:$0xff] %v761
        %1018 = vst [vmem:[%s134 + $0x388] sm:$0xff] %v762
        %1019 = vst [vmem:[%s134 + $0x390] sm:$0xff] %v763
        %1020 = vst [vmem:[%s134 + $0x398] sm:$0xff] %v764
        %1021 = vst [vmem:[%s134 + $0x3a0] sm:$0xff] %v765
        %1022 = vst [vmem:[%s134 + $0x3a8] sm:$0xff] %v766
        %1023 = vst [vmem:[%s134 + $0x3b0] sm:$0xff] %v767
        %1024 = vst [vmem:[%s134 + $0x3b8] sm:$0xff] %v768
        %1025 = vst [vmem:[%s134 + $0x3c0] sm:$0xff] %v769
        %1026 = vst [vmem:[%s134 + $0x3c8] sm:$0xff] %v770
        %1027 = vst [vmem:[%s134 + $0x3d0] sm:$0xff] %v771
        %1028 = vst [vmem:[%s134 + $0x3d8] sm:$0xff] %v772
        %1029 = vst [vmem:[%s134 + $0x3e0] sm:$0xff] %v773
        %1030 = vst [vmem:[%s134 + $0x3e8] sm:$0xff] %v774
        %1031 = vst [vmem:[%s134 + $0x3f0] sm:$0xff] %v775
        %1032 = vst [vmem:[%s134 + $0x3f8] sm:$0xff] %v776
        %1033 = vst [vmem:[%s134 + $0x400] sm:$0xff] %v777
        %1034 = vst [vmem:[%s134 + $0x408] sm:$0xff] %v778
        %1035 = vst [vmem:[%s134 + $0x410] sm:$0xff] %v779
        %1036 = vst [vmem:[%s134 + $0x418] sm:$0xff] %v780
        %1037 = vst [vmem:[%s134 + $0x420] sm:$0xff] %v781
        %1038 = vst [vmem:[%s134 + $0x428] sm:$0xff] %v782
        %1039 = vst [vmem:[%s134 + $0x430] sm:$0xff] %v783
        %1040 = vst [vmem:[%s134 + $0x438] sm:$0xff] %v784
        %1041 = vst [vmem:[%s134 + $0x440] sm:$0xff] %v785
        %1042 = vst [vmem:[%s134 + $0x448] sm:$0xff] %v786
        %1043 = vst [vmem:[%s134 + $0x450] sm:$0xff] %v787
        %1044 = vst [vmem:[%s134 + $0x458] sm:$0xff] %v788
        %1045 = vst [vmem:[%s134 + $0x460] sm:$0xff] %v789
        %1046 = vst [vmem:[%s134 + $0x468] sm:$0xff] %v790
        %1047 = vst [vmem:[%s134 + $0x470] sm:$0xff] %v791
        %1048 = vst [vmem:[%s134 + $0x478] sm:$0xff] %v792
        %1049 = vst [vmem:[%s134 + $0x480] sm:$0xff] %v793
        %1050 = vst [vmem:[%s134 + $0x488] sm:$0xff] %v794
        %1051 = vst [vmem:[%s134 + $0x490] sm:$0xff] %v795
        %1052 = vst [vmem:[%s134 + $0x498] sm:$0xff] %v796
        %1053 = vst [vmem:[%s134 + $0x4a0] sm:$0xff] %v797
        %1054 = vst [vmem:[%s134 + $0x4a8] sm:$0xff] %v798
        %1055 = vst [vmem:[%s134 + $0x4b0] sm:$0xff] %v799
        %1056 = vst [vmem:[%s134 + $0x4b8] sm:$0xff] %v800
        %1057 = vst [vmem:[%s134 + $0x4c0] sm:$0xff] %v801
        %1058 = vst [vmem:[%s134 + $0x4c8] sm:$0xff] %v802
        %1059 = vst [vmem:[%s134 + $0x4d0] sm:$0xff] %v803
        %1060 = vst [vmem:[%s134 + $0x4d8] sm:$0xff] %v804
        %1061 = vst [vmem:[%s134 + $0x4e0] sm:$0xff] %v805
        %1062 = vst [vmem:[%s134 + $0x4e8] sm:$0xff] %v806
        %1063 = vst [vmem:[%s134 + $0x4f0] sm:$0xff] %v807
        %1064 = vst [vmem:[%s134 + $0x4f8] sm:$0xff] %v808
        %1065 = vst [vmem:[%s134 + $0x500] sm:$0xff] %v809
        %1066 = vst [vmem:[%s134 + $0x508] sm:$0xff] %v810
        %1067 = vst [vmem:[%s134 + $0x510] sm:$0xff] %v811
        %1068 = vst [vmem:[%s134 + $0x518] sm:$0xff] %v812
        %1069 = vst [vmem:[%s134 + $0x520] sm:$0xff] %v813
        %1070 = vst [vmem:[%s134 + $0x528] sm:$0xff] %v814
        %1071 = vst [vmem:[%s134 + $0x530] sm:$0xff] %v815
        %1072 = vst [vmem:[%s134 + $0x538] sm:$0xff] %v816
        %1073 = vst [vmem:[%s134 + $0x540] sm:$0xff] %v817
        %1074 = vst [vmem:[%s134 + $0x548] sm:$0xff] %v818
        %1075 = vst [vmem:[%s134 + $0x550] sm:$0xff] %v819
        %1076 = vst [vmem:[%s134 + $0x558] sm:$0xff] %v820
        %1077 = vst [vmem:[%s134 + $0x560] sm:$0xff] %v821
        %1078 = vst [vmem:[%s134 + $0x568] sm:$0xff] %v822
        %1079 = vst [vmem:[%s134 + $0x570] sm:$0xff] %v823
        %1080 = vst [vmem:[%s134 + $0x578] sm:$0xff] %v824
        %1081 = vst [vmem:[%s134 + $0x580] sm:$0xff] %v825
        %1082 = vst [vmem:[%s134 + $0x588] sm:$0xff] %v826
        %1083 = vst [vmem:[%s134 + $0x590] sm:$0xff] %v827
        %1084 = vst [vmem:[%s134 + $0x598] sm:$0xff] %v828
        %1085 = vst [vmem:[%s134 + $0x5a0] sm:$0xff] %v829
        %1086 = vst [vmem:[%s134 + $0x5a8] sm:$0xff] %v830
        %1087 = vst [vmem:[%s134 + $0x5b0] sm:$0xff] %v831
        %1088 = vst [vmem:[%s134 + $0x5b8] sm:$0xff] %v832
        %1089 = vst [vmem:[%s134 + $0x5c0] sm:$0xff] %v833
        %1090 = vst [vmem:[%s134 + $0x5c8] sm:$0xff] %v834
        %1091 = vst [vmem:[%s134 + $0x5d0] sm:$0xff] %v835
        %1092 = vst [vmem:[%s134 + $0x5d8] sm:$0xff] %v836
        %1093 = vst [vmem:[%s134 + $0x5e0] sm:$0xff] %v837
        %1094 = vst [vmem:[%s134 + $0x5e8] sm:$0xff] %v838
        %1095 = vst [vmem:[%s134 + $0x5f0] sm:$0xff] %v839
        %1096 = vst [vmem:[%s134 + $0x5f8] sm:$0xff] %v840
        %1097 = vst [vmem:[%s134 + $0x600] sm:$0xff] %v841
        %1098 = vst [vmem:[%s134 + $0x608] sm:$0xff] %v842
        %1099 = vst [vmem:[%s134 + $0x610] sm:$0xff] %v843
        %1100 = vst [vmem:[%s134 + $0x618] sm:$0xff] %v844
        %1101 = vst [vmem:[%s134 + $0x620] sm:$0xff] %v845
        %1102 = vst [vmem:[%s134 + $0x628] sm:$0xff] %v846
        %1103 = vst [vmem:[%s134 + $0x630] sm:$0xff] %v847
        %1104 = vst [vmem:[%s134 + $0x638] sm:$0xff] %v848
        %1105 = vst [vmem:[%s134 + $0x640] sm:$0xff] %v849
        %1106 = vst [vmem:[%s134 + $0x648] sm:$0xff] %v850
        %1107 = vst [vmem:[%s134 + $0x650] sm:$0xff] %v851
        %1108 = vst [vmem:[%s134 + $0x658] sm:$0xff] %v852
        %1109 = vst [vmem:[%s134 + $0x660] sm:$0xff] %v853
        %1110 = vst [vmem:[%s134 + $0x668] sm:$0xff] %v854
        %1111 = vst [vmem:[%s134 + $0x670] sm:$0xff] %v855
        %1112 = vst [vmem:[%s134 + $0x678] sm:$0xff] %v856
        %1113 = vst [vmem:[%s134 + $0x680] sm:$0xff] %v857
        %1114 = vst [vmem:[%s134 + $0x688] sm:$0xff] %v858
        %1115 = vst [vmem:[%s134 + $0x690] sm:$0xff] %v859
        %1116 = vst [vmem:[%s134 + $0x698] sm:$0xff] %v860
        %1117 = vst [vmem:[%s134 + $0x6a0] sm:$0xff] %v861
        %1118 = vst [vmem:[%s134 + $0x6a8] sm:$0xff] %v862
        %1119 = vst [vmem:[%s134 + $0x6b0] sm:$0xff] %v863
        %1120 = vst [vmem:[%s134 + $0x6b8] sm:$0xff] %v864
        %1121 = vst [vmem:[%s134 + $0x6c0] sm:$0xff] %v865
        %1122 = vst [vmem:[%s134 + $0x6c8] sm:$0xff] %v866
        %1123 = vst [vmem:[%s134 + $0x6d0] sm:$0xff] %v867
        %1124 = vst [vmem:[%s134 + $0x6d8] sm:$0xff] %v868
        %1125 = vst [vmem:[%s134 + $0x6e0] sm:$0xff] %v869
        %1126 = vst [vmem:[%s134 + $0x6e8] sm:$0xff] %v870
        %1127 = vst [vmem:[%s134 + $0x6f0] sm:$0xff] %v871
        %1128 = vst [vmem:[%s134 + $0x6f8] sm:$0xff] %v872
        %1129 = vst [vmem:[%s134 + $0x700] sm:$0xff] %v873
        %1130 = vst [vmem:[%s134 + $0x708] sm:$0xff] %v874
        %1131 = vst [vmem:[%s134 + $0x710] sm:$0xff] %v875
        %1132 = vst [vmem:[%s134 + $0x718] sm:$0xff] %v876
        %1133 = vst [vmem:[%s134 + $0x720] sm:$0xff] %v877
        %1134 = vst [vmem:[%s134 + $0x728] sm:$0xff] %v878
        %1135 = vst [vmem:[%s134 + $0x730] sm:$0xff] %v879
        %1136 = vst [vmem:[%s134 + $0x738] sm:$0xff] %v880
        %1137 = vst [vmem:[%s134 + $0x740] sm:$0xff] %v881
        %1138 = vst [vmem:[%s134 + $0x748] sm:$0xff] %v882
        %1139 = vst [vmem:[%s134 + $0x750] sm:$0xff] %v883
        %1140 = vst [vmem:[%s134 + $0x758] sm:$0xff] %v884
        %1141 = vst [vmem:[%s134 + $0x760] sm:$0xff] %v885
        %1142 = vst [vmem:[%s134 + $0x768] sm:$0xff] %v886
        %1143 = vst [vmem:[%s134 + $0x770] sm:$0xff] %v887
        %1144 = vst [vmem:[%s134 + $0x778] sm:$0xff] %v888
        %1145 = vst [vmem:[%s134 + $0x780] sm:$0xff] %v889
        %1146 = vst [vmem:[%s134 + $0x788] sm:$0xff] %v890
        %1147 = vst [vmem:[%s134 + $0x790] sm:$0xff] %v891
        %1148 = vst [vmem:[%s134 + $0x798] sm:$0xff] %v892
        %1149 = vst [vmem:[%s134 + $0x7a0] sm:$0xff] %v893
        %1150 = vst [vmem:[%s134 + $0x7a8] sm:$0xff] %v894
        %1151 = vst [vmem:[%s134 + $0x7b0] sm:$0xff] %v895
        %1152 = vst [vmem:[%s134 + $0x7b8] sm:$0xff] %v896
        %1153 = vst [vmem:[%s134 + $0x7c0] sm:$0xff] %v897
        %1154 = vst [vmem:[%s134 + $0x7c8] sm:$0xff] %v898
        %1155 = vst [vmem:[%s134 + $0x7d0] sm:$0xff] %v899
        %1156 = vst [vmem:[%s134 + $0x7d8] sm:$0xff] %v900
        %1157 = vst [vmem:[%s134 + $0x7e0] sm:$0xff] %v901
        %1158 = vst [vmem:[%s134 + $0x7e8] sm:$0xff] %v902
        %1159 = vst [vmem:[%s134 + $0x7f0] sm:$0xff] %v903
        %1160 = vst [vmem:[%s134 + $0x7f8] sm:$0xff] %v904
        %s1161 = sand.u32 %s52, 1
        %s1162 = scalar_lea.sflag [#allocation4], %s1161
        %s1163 = sand.u32 %s52, 1
        %s1164 = smul.addr %s1163, 2048
        %s1165 = scalar_lea.vmem [#allocation5], %s1164
        // Predicated region
        $region29: #{tpu_custom_call.1} parent=23 // pred_check
          %p1166 = pneg %p62
        $region30: #{tpu_custom_call.1} parent=23 // pred_check_branch
          %1168 = sbr.rel (%p1166) target = $region32
        $region31: #{tpu_custom_call.1} parent=23 // pred_region
          %s1169 = smul.u32 256, %s18
          %s1171 = ssub.s32 32768, 32768
          %1172 = vsyncadd %s1162, %s1171
          %s1173 = smul.addr %s1169, 128
          %s1174 = scalar_lea.hbm %s1, %s1173
          %s1175 = sshll.u32 %s1165, 4
          %s1176 = int_to_ptr.vmem [resolvable:$true] %s1175
          %1181 = dma.vmem_to_hbm [thread:$0]  %s1176, 32768, %s1174, %s1162, 128, 128, 8
        $region32: #{tpu_custom_call.1} parent=23 // pred_fallthru
          _
      $region24: #{tpu_custom_call.1} parent=5 // pred_fallthru
        _
      %p1182 = scmp.le.s32.totalorder 2, %s13
      // Predicated region
      $region33: #{tpu_custom_call.1} parent=5 // pred_check
        %p1183 = pneg %p1182
      $region34: #{tpu_custom_call.1} parent=5 // pred_check_branch
        %1185 = sbr.rel (%p1183) target = $region36
      $region35: #{tpu_custom_call.1} parent=5 // pred_region
        %s1186 = ssub.s32 %s13, 2
        // Predicated region
        $region37: #{tpu_custom_call.1} parent=35 // pred_check
          %p1187 = pneg %p68
        $region38: #{tpu_custom_call.1} parent=35 // pred_check_branch
          %1189 = sbr.rel (%p1187) target = $region40
        $region39: #{tpu_custom_call.1} parent=35 // pred_region
          %s1190 = sand.u32 %s53, 1
          %s1191 = scalar_lea.sflag [#allocation4], %s1190
          %s1192 = sand.u32 %s53, 1
          %s1193 = smul.addr %s1192, 2048
          %s1194 = scalar_lea.vmem [#allocation5], %s1193
          %1195 = dma.done %s1191, 32768
        $region40: #{tpu_custom_call.1} parent=35 // pred_fallthru
          _
      $region36: #{tpu_custom_call.1} parent=5 // pred_fallthru
        _
    $region6: #{tpu_custom_call.1} parent=1 // loop_footer
      %s17 = sadd.s32 1, %s13
    $region7: #{tpu_custom_call.1} parent=1 // loop_footer_branch
      %12 = sbr.rel target = $region3
    $region8: #{tpu_custom_call.1} parent=1 // loop_exit
      _
    %1196 = vsyncpa [#allocation3], 1
    %s1197 = scalar_lea.sflag [#allocation3], 1
    %1198 = vsyncpa %s1197, 1
    %1199 = vsyncpa [#allocation4], 1
    %s1200 = scalar_lea.sflag [#allocation4], 1
    %1201 = vsyncpa %s1200, 1

</llo_original>
